<compile_context>
chip_gen: v7x
topology: tpu7x:2x2x1
jax: 0.10.0
libtpu: 0.0.40
codegen_flags: <defaults>
</compile_context>

<pallas_src>
import jax
import jax.numpy as jnp
from jax.experimental import pallas as pl
from jax.experimental.pallas import tpu as pltpu

_BN_EPS = 1e-5


def _residual_block_kernel(x_ref, wb1_ref, wb2_ref, shift_ref, o_ref):
    """Fused conv1+bn+relu+conv2+bn+add+relu; batch packed into the lane axis.

    x_ref:     (H, N*W*C)            input activations (batch/W/C fused in lanes)
    wb1_ref:   (3, N*W*C, N*W*C) bf16 banded + block-diag conv1 weights (BN scale folded)
    wb2_ref:   (3, N*W*C, N*W*C) bf16 banded + block-diag conv2 weights (BN scale folded)
    shift_ref: (2, N*W*C)        f32  folded BN shifts (row 0: after conv1, row 1: after conv2)
    o_ref:     (H, N*W*C)             output
    """
    h, lanes = o_ref.shape

    x = x_ref[...]
    xf = x.astype(jnp.float32)             # residual path in f32 (v5e-safe epilogue)
    shifts = shift_ref[...]                # hoisted: read the shift operand once
    shift1 = shifts[0:1, :]
    shift2 = shifts[1:2, :]

    row = jax.lax.broadcasted_iota(jnp.int32, (h, lanes), 0)
    is_top = row == 0
    is_bot = row == h - 1

    def conv3x3(zb, wb_ref):
        # Same-padded 3x3 conv = 3 banded MXU dots + XLU row rolls with border masks.
        t0 = jnp.dot(zb, wb_ref[0], preferred_element_type=jnp.float32)
        t1 = jnp.dot(zb, wb_ref[1], preferred_element_type=jnp.float32)
        t2 = jnp.dot(zb, wb_ref[2], preferred_element_type=jnp.float32)
        # out[r] = t0[r-1] + t1[r] + t2[r+1]; rows beyond the H border are zero.
        t0_down = jnp.where(is_top, 0.0, pltpu.roll(t0, 1, 0))
        t2_up = jnp.where(is_bot, 0.0, pltpu.roll(t2, h - 1, 0))
        return t1 + t0_down + t2_up

    # Y = relu(bn(conv1(X)))    -- stays on-chip, never round-trips through HBM
    y = jnp.maximum(conv3x3(x.astype(jnp.bfloat16), wb1_ref) + shift1, 0.0)
    # out = relu(bn(conv2(Y)) + X)
    out = conv3x3(y.astype(jnp.bfloat16), wb2_ref) + shift2 + xf
    o_ref[...] = jnp.maximum(out, 0.0).astype(o_ref.dtype)


def _banded_block_diag_weights(w_hwio, width, batch):
    """(3, 3, Cin, Cout) -> (3, batch*width*Cin, batch*width*Cout).

    Block-Toeplitz along W (so one dot of a lane-dense activation row performs
    the zero-padded 1-D conv along W for one vertical tap), block-diagonal over
    the batch that is packed into the lane axis.
    """
    kh, kw, cin, cout = w_hwio.shape
    p = jnp.arange(width)
    q = jnp.arange(width)
    k = jnp.arange(kw)
    sel = (p[None, :, None] == q[None, None, :] + k[:, None, None] - 1)
    sel = sel.astype(w_hwio.dtype)                            # (kw, W, W)
    wb = jnp.einsum("kpx,hkio->hpixo", sel, w_hwio)           # (kh, W, Cin, W, Cout)
    wb = wb.reshape(kh, width * cin, width * cout)
    eye = jnp.eye(batch, dtype=w_hwio.dtype)
    wbb = jnp.einsum("bB,hpq->hbpBq", eye, wb)                # block-diag over batch
    return wbb.reshape(kh, batch * width * cin, batch * width * cout)


def residual_forward(x, params):
    """Residual.forward (use_1x1conv=False, strides=1).  x: (N, H, W, C) NHWC."""
    n, h, w, cin = x.shape
    cout = params["w1"].shape[-1]
    assert cin == cout, "use_1x1conv=False requires input_channels == num_channels"

    # Inference-mode BatchNorm folded to per-channel scale/shift.  A single bn
    # module is shared after both convs, exactly as in the PyTorch spec.
    scale = params["gamma"] / jnp.sqrt(params["var"] + _BN_EPS)
    shift1 = (params["b1"] - params["mean"]) * scale + params["beta"]
    shift2 = (params["b2"] - params["mean"]) * scale + params["beta"]

    # BN scale folded into the conv weights before the bf16 cast, then made
    # banded along W and block-diagonal over the lane-packed batch.
    wb1 = _banded_block_diag_weights(params["w1"] * scale, w, n).astype(jnp.bfloat16)
    wb2 = _banded_block_diag_weights(params["w2"] * scale, w, n).astype(jnp.bfloat16)
    # Both shifts in one lane-dense (2, N*W*C) operand -> a single tiny DMA.
    shifts = jnp.stack([jnp.tile(shift1, n * w),
                        jnp.tile(shift2, n * w)]).astype(jnp.float32)

    # Lane-dense packing: (N, H, W, C) -> (H, N*W*C).  128 lanes at this shape,
    # so stores are unmasked vst and every MXU dot is (16,128)x(128,128).
    # (Wrapper-side layout plumbing only; no compute moved out of the kernel.)
    x_packed = jnp.transpose(x, (1, 0, 2, 3)).reshape(h, n * w * cin)

    lanes = n * w * cout
    cost = pl.CostEstimate(
        flops=2 * 3 * 2 * h * (n * w * cin) * lanes,
        transcendentals=0,
        bytes_accessed=(x_packed.size * x_packed.dtype.itemsize
                        + wb1.size * 2 + wb2.size * 2 + shifts.size * 4
                        + h * lanes * x.dtype.itemsize),
    )

    out = pl.pallas_call(
        _residual_block_kernel,
        out_shape=jax.ShapeDtypeStruct((h, lanes), x.dtype),
        cost_estimate=cost,
    )(x_packed, wb1, wb2, shifts)

    return out.reshape(h, n, w, cout).transpose(1, 0, 2, 3)


def residual_forward_ref(x, params):
    """Pure-JAX reference (inference BN; scale folded into bf16 conv weights,
    f32 accumulation and f32 residual/epilogue — same numerics as the kernel)."""
    scale = params["gamma"] / jnp.sqrt(params["var"] + _BN_EPS)
    shift1 = (params["b1"] - params["mean"]) * scale + params["beta"]
    shift2 = (params["b2"] - params["mean"]) * scale + params["beta"]

    def conv_bn(z, wgt):
        return jax.lax.conv_general_dilated(
            z.astype(jnp.bfloat16), (wgt * scale).astype(jnp.bfloat16),
            window_strides=(1, 1), padding="SAME",
            dimension_numbers=("NHWC", "HWIO", "NHWC"),
            preferred_element_type=jnp.float32)

    xf = x.astype(jnp.float32)
    y = jax.nn.relu(conv_bn(x, params["w1"]) + shift1)
    out = jax.nn.relu(conv_bn(y, params["w2"]) + shift2 + xf)
    return out.astype(x.dtype)


if __name__ == "__main__":
    # Residual(input_channels=4, num_channels=4, use_1x1conv=False, strides=1)
    N, C, H, W = 2, 4, 16, 16          # PyTorch input would be NCHW (2, 4, 16, 16)
    key = jax.random.PRNGKey(0)
    ks = jax.random.split(key, 9)

    x_nchw = jax.random.normal(ks[0], (N, C, H, W), jnp.float32)
    x = jnp.transpose(x_nchw, (0, 2, 3, 1))        # NCHW -> NHWC

    params = {
        "w1": jax.random.normal(ks[1], (3, 3, C, C), jnp.float32) * 0.1,
        "b1": jax.random.normal(ks[2], (C,), jnp.float32) * 0.1,
        "w2": jax.random.normal(ks[3], (3, 3, C, C), jnp.float32) * 0.1,
        "b2": jax.random.normal(ks[4], (C,), jnp.float32) * 0.1,
        "gamma": jax.random.uniform(ks[5], (C,), jnp.float32, 0.5, 1.5),
        "beta": jax.random.normal(ks[6], (C,), jnp.float32) * 0.1,
        "mean": jax.random.normal(ks[7], (C,), jnp.float32) * 0.1,
        "var": jax.random.uniform(ks[8], (C,), jnp.float32, 0.5, 1.5),
    }

    out = jax.jit(residual_forward)(x, params)
    out = jax.block_until_ready(out)

    ref = residual_forward_ref(x, params)
    assert out.shape == (N, H, W, C)
    assert jnp.allclose(out, ref, atol=2e-3, rtol=2e-3), "mismatch vs JAX reference"

    print("KERNEL_OK")
</pallas_src>

<mosaic_0001>
module attributes {stable_mosaic.version = 11 : i64} {
  func.func @_residual_block_kernel(%arg0: memref<16x128xf32, #tpu.memory_space<vmem>>, %arg1: memref<3x128x128xbf16, #tpu.memory_space<vmem>>, %arg2: memref<3x128x128xbf16, #tpu.memory_space<vmem>>, %arg3: memref<2x128xf32, #tpu.memory_space<vmem>>, %arg4: memref<16x128xf32, #tpu.memory_space<vmem>>) attributes {dimension_semantics = [], scalar_prefetch = 0 : i64, scratch_operands = 0 : i64, tpu.core_type = #tpu.core_type<tc>} {
    %c0 = arith.constant 0 : index
    %c0_0 = arith.constant 0 : index
    %0 = vector.load %arg0[%c0, %c0_0] : memref<16x128xf32, #tpu.memory_space<vmem>>, vector<16x128xf32>
    %c0_1 = arith.constant 0 : index
    %c0_2 = arith.constant 0 : index
    %1 = vector.load %arg3[%c0_1, %c0_2] : memref<2x128xf32, #tpu.memory_space<vmem>>, vector<2x128xf32>
    %2 = vector.extract_strided_slice %1 {offsets = [0, 0], sizes = [1, 128], strides = [1, 1]} : vector<2x128xf32> to vector<1x128xf32>
    %3 = vector.extract_strided_slice %1 {offsets = [1, 0], sizes = [1, 128], strides = [1, 1]} : vector<2x128xf32> to vector<1x128xf32>
    %4 = tpu.iota {dimensions = array<i32: 0>} : vector<16x128xi32>
    %c0_i32 = arith.constant 0 : i32
    %5 = vector.broadcast %c0_i32 : i32 to vector<16x128xi32>
    %6 = arith.cmpi eq, %4, %5 : vector<16x128xi32>
    %c15_i32 = arith.constant 15 : i32
    %7 = vector.broadcast %c15_i32 : i32 to vector<16x128xi32>
    %8 = arith.cmpi eq, %4, %7 : vector<16x128xi32>
    %9 = arith.truncf %0 : vector<16x128xf32> to vector<16x128xbf16>
    %c0_3 = arith.constant 0 : index
    %c0_4 = arith.constant 0 : index
    %c0_5 = arith.constant 0 : index
    %10 = vector.load %arg1[%c0_3, %c0_4, %c0_5] : memref<3x128x128xbf16, #tpu.memory_space<vmem>>, vector<1x128x128xbf16>
    %11 = vector.shape_cast %10 : vector<1x128x128xbf16> to vector<128x128xbf16>
    %cst = arith.constant dense<0.000000e+00> : vector<16x128xf32>
    %12 = tpu.matmul %9, %11, %cst {dimension_numbers = #tpu.dot_dimension_numbers<[1], [0], [0], [1], [0, 0, 1, 1], [], []>} : vector<16x128xbf16>, vector<128x128xbf16>, vector<16x128xf32> -> vector<16x128xf32>
    %c1 = arith.constant 1 : index
    %c0_6 = arith.constant 0 : index
    %c0_7 = arith.constant 0 : index
    %13 = vector.load %arg1[%c1, %c0_6, %c0_7] : memref<3x128x128xbf16, #tpu.memory_space<vmem>>, vector<1x128x128xbf16>
    %14 = vector.shape_cast %13 : vector<1x128x128xbf16> to vector<128x128xbf16>
    %cst_8 = arith.constant dense<0.000000e+00> : vector<16x128xf32>
    %15 = tpu.matmul %9, %14, %cst_8 {dimension_numbers = #tpu.dot_dimension_numbers<[1], [0], [0], [1], [0, 0, 1, 1], [], []>} : vector<16x128xbf16>, vector<128x128xbf16>, vector<16x128xf32> -> vector<16x128xf32>
    %c2 = arith.constant 2 : index
    %c0_9 = arith.constant 0 : index
    %c0_10 = arith.constant 0 : index
    %16 = vector.load %arg1[%c2, %c0_9, %c0_10] : memref<3x128x128xbf16, #tpu.memory_space<vmem>>, vector<1x128x128xbf16>
    %17 = vector.shape_cast %16 : vector<1x128x128xbf16> to vector<128x128xbf16>
    %cst_11 = arith.constant dense<0.000000e+00> : vector<16x128xf32>
    %18 = tpu.matmul %9, %17, %cst_11 {dimension_numbers = #tpu.dot_dimension_numbers<[1], [0], [0], [1], [0, 0, 1, 1], [], []>} : vector<16x128xbf16>, vector<128x128xbf16>, vector<16x128xf32> -> vector<16x128xf32>
    %c1_i32 = arith.constant 1 : i32
    %19 = tpu.dynamic_rotate %12 by %c1_i32 dim 0 : vector<16x128xf32>, i32 -> vector<16x128xf32>
    %cst_12 = arith.constant 0.000000e+00 : f32
    %20 = vector.broadcast %cst_12 : f32 to vector<16x128xf32>
    %21 = arith.select %6, %20, %19 : vector<16x128xi1>, vector<16x128xf32>
    %c15_i32_13 = arith.constant 15 : i32
    %22 = tpu.dynamic_rotate %18 by %c15_i32_13 dim 0 : vector<16x128xf32>, i32 -> vector<16x128xf32>
    %cst_14 = arith.constant 0.000000e+00 : f32
    %23 = vector.broadcast %cst_14 : f32 to vector<16x128xf32>
    %24 = arith.select %8, %23, %22 : vector<16x128xi1>, vector<16x128xf32>
    %25 = arith.addf %15, %21 : vector<16x128xf32>
    %26 = arith.addf %25, %24 : vector<16x128xf32>
    %27 = vector.broadcast %2 : vector<1x128xf32> to vector<16x128xf32>
    %28 = arith.addf %26, %27 : vector<16x128xf32>
    %cst_15 = arith.constant 0.000000e+00 : f32
    %29 = vector.broadcast %cst_15 : f32 to vector<16x128xf32>
    %30 = arith.maximumf %28, %29 : vector<16x128xf32>
    %31 = arith.truncf %30 : vector<16x128xf32> to vector<16x128xbf16>
    %c0_16 = arith.constant 0 : index
    %c0_17 = arith.constant 0 : index
    %c0_18 = arith.constant 0 : index
    %32 = vector.load %arg2[%c0_16, %c0_17, %c0_18] : memref<3x128x128xbf16, #tpu.memory_space<vmem>>, vector<1x128x128xbf16>
    %33 = vector.shape_cast %32 : vector<1x128x128xbf16> to vector<128x128xbf16>
    %cst_19 = arith.constant dense<0.000000e+00> : vector<16x128xf32>
    %34 = tpu.matmul %31, %33, %cst_19 {dimension_numbers = #tpu.dot_dimension_numbers<[1], [0], [0], [1], [0, 0, 1, 1], [], []>} : vector<16x128xbf16>, vector<128x128xbf16>, vector<16x128xf32> -> vector<16x128xf32>
    %c1_20 = arith.constant 1 : index
    %c0_21 = arith.constant 0 : index
    %c0_22 = arith.constant 0 : index
    %35 = vector.load %arg2[%c1_20, %c0_21, %c0_22] : memref<3x128x128xbf16, #tpu.memory_space<vmem>>, vector<1x128x128xbf16>
    %36 = vector.shape_cast %35 : vector<1x128x128xbf16> to vector<128x128xbf16>
    %cst_23 = arith.constant dense<0.000000e+00> : vector<16x128xf32>
    %37 = tpu.matmul %31, %36, %cst_23 {dimension_numbers = #tpu.dot_dimension_numbers<[1], [0], [0], [1], [0, 0, 1, 1], [], []>} : vector<16x128xbf16>, vector<128x128xbf16>, vector<16x128xf32> -> vector<16x128xf32>
    %c2_24 = arith.constant 2 : index
    %c0_25 = arith.constant 0 : index
    %c0_26 = arith.constant 0 : index
    %38 = vector.load %arg2[%c2_24, %c0_25, %c0_26] : memref<3x128x128xbf16, #tpu.memory_space<vmem>>, vector<1x128x128xbf16>
    %39 = vector.shape_cast %38 : vector<1x128x128xbf16> to vector<128x128xbf16>
    %cst_27 = arith.constant dense<0.000000e+00> : vector<16x128xf32>
    %40 = tpu.matmul %31, %39, %cst_27 {dimension_numbers = #tpu.dot_dimension_numbers<[1], [0], [0], [1], [0, 0, 1, 1], [], []>} : vector<16x128xbf16>, vector<128x128xbf16>, vector<16x128xf32> -> vector<16x128xf32>
    %c1_i32_28 = arith.constant 1 : i32
    %41 = tpu.dynamic_rotate %34 by %c1_i32_28 dim 0 : vector<16x128xf32>, i32 -> vector<16x128xf32>
    %cst_29 = arith.constant 0.000000e+00 : f32
    %42 = vector.broadcast %cst_29 : f32 to vector<16x128xf32>
    %43 = arith.select %6, %42, %41 : vector<16x128xi1>, vector<16x128xf32>
    %c15_i32_30 = arith.constant 15 : i32
    %44 = tpu.dynamic_rotate %40 by %c15_i32_30 dim 0 : vector<16x128xf32>, i32 -> vector<16x128xf32>
    %cst_31 = arith.constant 0.000000e+00 : f32
    %45 = vector.broadcast %cst_31 : f32 to vector<16x128xf32>
    %46 = arith.select %8, %45, %44 : vector<16x128xi1>, vector<16x128xf32>
    %47 = arith.addf %37, %43 : vector<16x128xf32>
    %48 = arith.addf %47, %46 : vector<16x128xf32>
    %49 = vector.broadcast %3 : vector<1x128xf32> to vector<16x128xf32>
    %50 = arith.addf %48, %49 : vector<16x128xf32>
    %51 = arith.addf %50, %0 : vector<16x128xf32>
    %cst_32 = arith.constant 0.000000e+00 : f32
    %52 = vector.broadcast %cst_32 : f32 to vector<16x128xf32>
    %53 = arith.maximumf %51, %52 : vector<16x128xf32>
    %c0_33 = arith.constant 0 : index
    %c0_34 = arith.constant 0 : index
    %54 = vector.load %arg4[%c0_33, %c0_34] : memref<16x128xf32, #tpu.memory_space<vmem>>, vector<16x128xf32>
    tpu.vector_store %arg4[%c0_33, %c0_34], %53 {strides = array<i32>} : memref<16x128xf32, #tpu.memory_space<vmem>>, vector<16x128xf32>,
    return
  }
}

</mosaic_0001>

<llo_original>
// kernel: tile.17
$region0: #{tile.17}
  #allocation0 [shape = 's32[1]{0}', space=sflag, size = 0x4, scoped, tag = 'scoped memory for tile.17']
  %s0 = inlined_call_operand.vmem [shape: f32[4], index: 0, kind: input, shape index: {}]
  %s1 = inlined_call_operand.vmem [shape: f32[32,4], index: 1, kind: output, shape index: {}]
  // Predicated region
  $region2: #{tile.17} parent=0 // pred_check
    _
  $region3: #{tile.17} parent=0 // pred_check_branch
    %3 = sbr.rel (0) target = $region5
  $region4: #{tile.17} parent=0 // pred_region
    _
  $region5: #{tile.17} parent=0 // pred_fallthru
    _
  %v4 = vld [vmem:[%s0] ss:$0 sm:$0xff]
  %5 = vst [vmem:[%s1] sm:$0xff] %v4
  %s6 = scalar_lea.vmem %s1, 8
  %7 = vst [vmem:[%s6] sm:$0xff] %v4
  %s8 = scalar_lea.vmem %s1, 16
  %9 = vst [vmem:[%s8] sm:$0xff] %v4
  %s10 = scalar_lea.vmem %s1, 24
  %11 = vst [vmem:[%s10] sm:$0xff] %v4

// kernel: tile.19
$region0: #{tile.19}
  %s0 = inlined_call_operand.vmem [shape: f32[32,4], index: 0, kind: input, shape index: {}]
  %s1 = inlined_call_operand.vmem [shape: f32[1,128], index: 1, kind: output, shape index: {}]
  $region1: #{tile.19} parent=0
    #allocation0 [shape = 'u8[4096]{0}', space=vmem, size = 0x1000, scoped, tag = 'scoped mem for output reshape']
    %v2 = vld [vmem:[%s0] sm:$0x1]
    %vm3 = vcmask 31744
    %4 = vst.msk [vmem:[#allocation0] sm:$0x1] %vm3, %v2
    %s5 = scalar_lea.vmem %s0, 31
    %v6 = vld [vmem:[%s5] sm:$0x1]
    %7 = vrot.lane.b32.xlu0 %v6, 124
    %v8 = vpop.permute.xlu0 %7
    %vm9 = vcmask 1048544
    %10 = vst.msk [vmem:[#allocation0] sm:$0x1] %vm9, %v8
    %s11 = scalar_lea.vmem %s0, 30
    %v12 = vld [vmem:[%s11] sm:$0x1]
    %13 = vrot.lane.b32.xlu0 %v12, 120
    %v14 = vpop.permute.xlu0 %13
    %vm15 = vcmask 1015744
    %16 = vst.msk [vmem:[#allocation0] sm:$0x1] %vm15, %v14
    %s17 = scalar_lea.vmem %s0, 29
    %v18 = vld [vmem:[%s17] sm:$0x1]
    %19 = vrot.lane.b32.xlu0 %v18, 116
    %v20 = vpop.permute.xlu0 %19
    %vm21 = vcmask 982944
    %22 = vst.msk [vmem:[#allocation0] sm:$0x1] %vm21, %v20
    %s23 = scalar_lea.vmem %s0, 28
    %v24 = vld [vmem:[%s23] sm:$0x1]
    %25 = vrot.lane.b32.xlu0 %v24, 112
    %v26 = vpop.permute.xlu0 %25
    %vm27 = vcmask 950144
    %28 = vst.msk [vmem:[#allocation0] sm:$0x1] %vm27, %v26
    %s29 = scalar_lea.vmem %s0, 27
    %v30 = vld [vmem:[%s29] sm:$0x1]
    %31 = vrot.lane.b32.xlu0 %v30, 108
    %v32 = vpop.permute.xlu0 %31
    %vm33 = vcmask 917344
    %34 = vst.msk [vmem:[#allocation0] sm:$0x1] %vm33, %v32
    %s35 = scalar_lea.vmem %s0, 26
    %v36 = vld [vmem:[%s35] sm:$0x1]
    %37 = vrot.lane.b32.xlu0 %v36, 104
    %v38 = vpop.permute.xlu0 %37
    %vm39 = vcmask 884544
    %40 = vst.msk [vmem:[#allocation0] sm:$0x1] %vm39, %v38
    %s41 = scalar_lea.vmem %s0, 25
    %v42 = vld [vmem:[%s41] sm:$0x1]
    %43 = vrot.lane.b32.xlu0 %v42, 100
    %v44 = vpop.permute.xlu0 %43
    %vm45 = vcmask 851744
    %46 = vst.msk [vmem:[#allocation0] sm:$0x1] %vm45, %v44
    %s47 = scalar_lea.vmem %s0, 24
    %v48 = vld [vmem:[%s47] sm:$0x1]
    %49 = vrot.lane.b32.xlu0 %v48, 96
    %v50 = vpop.permute.xlu0 %49
    %vm51 = vcmask 818944
    %52 = vst.msk [vmem:[#allocation0] sm:$0x1] %vm51, %v50
    %s53 = scalar_lea.vmem %s0, 23
    %v54 = vld [vmem:[%s53] sm:$0x1]
    %55 = vrot.lane.b32.xlu0 %v54, 92
    %v56 = vpop.permute.xlu0 %55
    %vm57 = vcmask 786144
    %58 = vst.msk [vmem:[#allocation0] sm:$0x1] %vm57, %v56
    %s59 = scalar_lea.vmem %s0, 22
    %v60 = vld [vmem:[%s59] sm:$0x1]
    %61 = vrot.lane.b32.xlu0 %v60, 88
    %v62 = vpop.permute.xlu0 %61
    %vm63 = vcmask 753344
    %64 = vst.msk [vmem:[#allocation0] sm:$0x1] %vm63, %v62
    %s65 = scalar_lea.vmem %s0, 21
    %v66 = vld [vmem:[%s65] sm:$0x1]
    %67 = vrot.lane.b32.xlu0 %v66, 84
    %v68 = vpop.permute.xlu0 %67
    %vm69 = vcmask 720544
    %70 = vst.msk [vmem:[#allocation0] sm:$0x1] %vm69, %v68
    %s71 = scalar_lea.vmem %s0, 20
    %v72 = vld [vmem:[%s71] sm:$0x1]
    %73 = vrot.lane.b32.xlu0 %v72, 80
    %v74 = vpop.permute.xlu0 %73
    %vm75 = vcmask 687744
    %76 = vst.msk [vmem:[#allocation0] sm:$0x1] %vm75, %v74
    %s77 = scalar_lea.vmem %s0, 19
    %v78 = vld [vmem:[%s77] sm:$0x1]
    %79 = vrot.lane.b32.xlu0 %v78, 76
    %v80 = vpop.permute.xlu0 %79
    %vm81 = vcmask 654944
    %82 = vst.msk [vmem:[#allocation0] sm:$0x1] %vm81, %v80
    %s83 = scalar_lea.vmem %s0, 18
    %v84 = vld [vmem:[%s83] sm:$0x1]
    %85 = vrot.lane.b32.xlu0 %v84, 72
    %v86 = vpop.permute.xlu0 %85
    %vm87 = vcmask 622144
    %88 = vst.msk [vmem:[#allocation0] sm:$0x1] %vm87, %v86
    %s89 = scalar_lea.vmem %s0, 17
    %v90 = vld [vmem:[%s89] sm:$0x1]
    %91 = vrot.lane.b32.xlu0 %v90, 68
    %v92 = vpop.permute.xlu0 %91
    %vm93 = vcmask 589344
    %94 = vst.msk [vmem:[#allocation0] sm:$0x1] %vm93, %v92
    %s95 = scalar_lea.vmem %s0, 16
    %v96 = vld [vmem:[%s95] sm:$0x1]
    %97 = vrot.lane.b32.xlu0 %v96, 64
    %v98 = vpop.permute.xlu0 %97
    %vm99 = vcmask 556544
    %100 = vst.msk [vmem:[#allocation0] sm:$0x1] %vm99, %v98
    %s101 = scalar_lea.vmem %s0, 15
    %v102 = vld [vmem:[%s101] sm:$0x1]
    %103 = vrot.lane.b32.xlu0 %v102, 60
    %v104 = vpop.permute.xlu0 %103
    %vm105 = vcmask 523744
    %106 = vst.msk [vmem:[#allocation0] sm:$0x1] %vm105, %v104
    %s107 = scalar_lea.vmem %s0, 14
    %v108 = vld [vmem:[%s107] sm:$0x1]
    %109 = vrot.lane.b32.xlu0 %v108, 56
    %v110 = vpop.permute.xlu0 %109
    %vm111 = vcmask 490944
    %112 = vst.msk [vmem:[#allocation0] sm:$0x1] %vm111, %v110
    %s113 = scalar_lea.vmem %s0, 13
    %v114 = vld [vmem:[%s113] sm:$0x1]
    %115 = vrot.lane.b32.xlu0 %v114, 52
    %v116 = vpop.permute.xlu0 %115
    %vm117 = vcmask 458144
    %118 = vst.msk [vmem:[#allocation0] sm:$0x1] %vm117, %v116
    %s119 = scalar_lea.vmem %s0, 12
    %v120 = vld [vmem:[%s119] sm:$0x1]
    %121 = vrot.lane.b32.xlu0 %v120, 48
    %v122 = vpop.permute.xlu0 %121
    %vm123 = vcmask 425344
    %124 = vst.msk [vmem:[#allocation0] sm:$0x1] %vm123, %v122
    %s125 = scalar_lea.vmem %s0, 11
    %v126 = vld [vmem:[%s125] sm:$0x1]
    %127 = vrot.lane.b32.xlu0 %v126, 44
    %v128 = vpop.permute.xlu0 %127
    %vm129 = vcmask 392544
    %130 = vst.msk [vmem:[#allocation0] sm:$0x1] %vm129, %v128
    %s131 = scalar_lea.vmem %s0, 10
    %v132 = vld [vmem:[%s131] sm:$0x1]
    %133 = vrot.lane.b32.xlu0 %v132, 40
    %v134 = vpop.permute.xlu0 %133
    %vm135 = vcmask 359744
    %136 = vst.msk [vmem:[#allocation0] sm:$0x1] %vm135, %v134
    %s137 = scalar_lea.vmem %s0, 9
    %v138 = vld [vmem:[%s137] sm:$0x1]
    %139 = vrot.lane.b32.xlu0 %v138, 36
    %v140 = vpop.permute.xlu0 %139
    %vm141 = vcmask 326944
    %142 = vst.msk [vmem:[#allocation0] sm:$0x1] %vm141, %v140
    %s143 = scalar_lea.vmem %s0, 8
    %v144 = vld [vmem:[%s143] sm:$0x1]
    %145 = vrot.lane.b32.xlu0 %v144, 32
    %v146 = vpop.permute.xlu0 %145
    %vm147 = vcmask 294144
    %148 = vst.msk [vmem:[#allocation0] sm:$0x1] %vm147, %v146
    %s149 = scalar_lea.vmem %s0, 7
    %v150 = vld [vmem:[%s149] sm:$0x1]
    %151 = vrot.lane.b32.xlu0 %v150, 28
    %v152 = vpop.permute.xlu0 %151
    %vm153 = vcmask 261344
    %154 = vst.msk [vmem:[#allocation0] sm:$0x1] %vm153, %v152
    %s155 = scalar_lea.vmem %s0, 6
    %v156 = vld [vmem:[%s155] sm:$0x1]
    %157 = vrot.lane.b32.xlu0 %v156, 24
    %v158 = vpop.permute.xlu0 %157
    %vm159 = vcmask 228544
    %160 = vst.msk [vmem:[#allocation0] sm:$0x1] %vm159, %v158
    %s161 = scalar_lea.vmem %s0, 5
    %v162 = vld [vmem:[%s161] sm:$0x1]
    %163 = vrot.lane.b32.xlu0 %v162, 20
    %v164 = vpop.permute.xlu0 %163
    %vm165 = vcmask 195744
    %166 = vst.msk [vmem:[#allocation0] sm:$0x1] %vm165, %v164
    %s167 = scalar_lea.vmem %s0, 4
    %v168 = vld [vmem:[%s167] sm:$0x1]
    %169 = vrot.lane.b32.xlu0 %v168, 16
    %v170 = vpop.permute.xlu0 %169
    %vm171 = vcmask 162944
    %172 = vst.msk [vmem:[#allocation0] sm:$0x1] %vm171, %v170
    %s173 = scalar_lea.vmem %s0, 3
    %v174 = vld [vmem:[%s173] sm:$0x1]
    %175 = vrot.lane.b32.xlu0 %v174, 12
    %v176 = vpop.permute.xlu0 %175
    %vm177 = vcmask 130144
    %178 = vst.msk [vmem:[#allocation0] sm:$0x1] %vm177, %v176
    %s179 = scalar_lea.vmem %s0, 2
    %v180 = vld [vmem:[%s179] sm:$0x1]
    %181 = vrot.lane.b32.xlu0 %v180, 8
    %v182 = vpop.permute.xlu0 %181
    %vm183 = vcmask 97344
    %184 = vst.msk [vmem:[#allocation0] sm:$0x1] %vm183, %v182
    %s185 = scalar_lea.vmem %s0, 1
    %v186 = vld [vmem:[%s185] sm:$0x1]
    %187 = vrot.lane.b32.xlu0 %v186, 4
    %v188 = vpop.permute.xlu0 %187
    %vm189 = vcmask 64544
    %190 = vst.msk [vmem:[#allocation0] sm:$0x1] %vm189, %v188
    %s192 = sshllo.u32 0, 1
    %v194 = vld [vmem:[#allocation0] sm:%s192]
    %s195 = sshllo.u32 0, 1
    %196 = vst [vmem:[%s1] sm:%s195] %v194

// kernel: residual_forward.1
$region0: #{residual_forward.1}
  #allocation0 [shape = 'u32[]', space=smem, size = 0x4, offset = 0x4, fixed_abs, tag = 'smem constant byte address 0x4 - core index']
  #allocation1 [shape = 'u32[144,128]{1,0:T(1,128)}', space=vmem, size = 0x12000, scoped, tag = 'internal scratch']
  %s0 = inlined_call_operand.vmem [shape: f32[16,128], index: 0, kind: input, shape index: {}]
  %s1 = inlined_call_operand.vmem [shape: bf16[3,128,128], index: 1, kind: input, shape index: {}]
  %s2 = inlined_call_operand.vmem [shape: bf16[3,128,128], index: 2, kind: input, shape index: {}]
  %s3 = inlined_call_operand.vmem [shape: f32[2,128], index: 3, kind: input, shape index: {}]
  %s4 = inlined_call_operand.vmem [shape: f32[16,128], index: 4, kind: output, shape index: {}]
  %s5 = sld [smem:[#allocation0]]
  $region26: #{residual_forward.1} parent=0
    _
  %s7 = ssub.s32 1, %s5
  %s8 = scalar_select 0, %s7, %s5
  // Predicated region
  $region2: #{residual_forward.1} parent=0 // pred_check
    _
  $region3: #{residual_forward.1} parent=0 // pred_check_branch
    %10 = sbr.rel (0) target = $region5
  $region4: #{residual_forward.1} parent=0 // pred_region
    _
  $region5: #{residual_forward.1} parent=0 // pred_fallthru
    _
  // Predicated region
  $region6: #{residual_forward.1} parent=0 // pred_check
    _
  $region7: #{residual_forward.1} parent=0 // pred_check_branch
    %12 = sbr.rel (0) target = $region9
  $region8: #{residual_forward.1} parent=0 // pred_region
    _
  $region9: #{residual_forward.1} parent=0 // pred_fallthru
    _
  // Predicated region
  $region10: #{residual_forward.1} parent=0 // pred_check
    _
  $region11: #{residual_forward.1} parent=0 // pred_check_branch
    %14 = sbr.rel (0) target = $region13
  $region12: #{residual_forward.1} parent=0 // pred_region
    _
  $region13: #{residual_forward.1} parent=0 // pred_fallthru
    _
  // Predicated region
  $region14: #{residual_forward.1} parent=0 // pred_check
    _
  $region15: #{residual_forward.1} parent=0 // pred_check_branch
    %16 = sbr.rel (0) target = $region17
  $region16: #{residual_forward.1} parent=0 // pred_region
    _
  $region17: #{residual_forward.1} parent=0 // pred_fallthru
    _
  %v18 = vld [vmem:[%s0] sm:$0xff]
  %v19 = vld [vmem:[%s0 + $0x8] sm:$0xff]
  %v20 = vld [vmem:[%s3] sm:$0x3]
  %v21 = vlaneseq
  %v22 = vshrl.u32 %v21, 7
  %v23 = vadd.s32 %v22, 8
  %vm24 = vcmp.eq.s32.totalorder %v22, 0
  %vm25 = vcmp.eq.s32.totalorder %v23, 0
  %vm26 = vcmp.eq.s32.totalorder %v22, 15
  %vm27 = vcmp.eq.s32.totalorder %v23, 15
  %v28 = vpack.c.bf16 %v19, %v18
  %v29 = vld [vmem:[%s1] sm:$0xf]
  %v30 = vld [vmem:[%s1 + $0x4] sm:$0xf]
  %v31 = vld [vmem:[%s1 + $0x8] sm:$0xf]
  %v32 = vld [vmem:[%s1 + $0xc] sm:$0xf]
  %v33 = vld [vmem:[%s1 + $0x10] sm:$0xf]
  %v34 = vld [vmem:[%s1 + $0x14] sm:$0xf]
  %v35 = vld [vmem:[%s1 + $0x18] sm:$0xf]
  %v36 = vld [vmem:[%s1 + $0x1c] sm:$0xf]
  %v37 = vld [vmem:[%s1 + $0x20] sm:$0xf]
  %v38 = vld [vmem:[%s1 + $0x24] sm:$0xf]
  %v39 = vld [vmem:[%s1 + $0x28] sm:$0xf]
  %v40 = vld [vmem:[%s1 + $0x2c] sm:$0xf]
  %v41 = vld [vmem:[%s1 + $0x30] sm:$0xf]
  %v42 = vld [vmem:[%s1 + $0x34] sm:$0xf]
  %v43 = vld [vmem:[%s1 + $0x38] sm:$0xf]
  %v44 = vld [vmem:[%s1 + $0x3c] sm:$0xf]
  %v61 = vunpack.c.l.b16 %v29
  %v62 = vunpack.c.l.b16 %v30
  %v63 = vunpack.c.l.b16 %v31
  %v64 = vunpack.c.l.b16 %v32
  %v65 = vunpack.c.l.b16 %v33
  %v66 = vunpack.c.l.b16 %v34
  %v67 = vunpack.c.l.b16 %v35
  %v68 = vunpack.c.l.b16 %v36
  %v69 = vunpack.c.l.b16 %v37
  %v70 = vunpack.c.l.b16 %v38
  %v71 = vunpack.c.l.b16 %v39
  %v72 = vunpack.c.l.b16 %v40
  %v73 = vunpack.c.l.b16 %v41
  %v74 = vunpack.c.l.b16 %v42
  %v75 = vunpack.c.l.b16 %v43
  %v76 = vunpack.c.l.b16 %v44
  %v77 = vpack.c.b16 %v62, %v61
  %v78 = vpack.c.b16 %v64, %v63
  %v79 = vpack.c.b16 %v66, %v65
  %v80 = vpack.c.b16 %v68, %v67
  %v81 = vpack.c.b16 %v70, %v69
  %v82 = vpack.c.b16 %v72, %v71
  %v83 = vpack.c.b16 %v74, %v73
  %v84 = vpack.c.b16 %v76, %v75
  %93 = vmatprep.subr.bf16.mxu0 0
  %94 = vmatpush1.bf16.msra.mxu0 %v77
  %95 = vmatprep.subr.bf16.mxu0 0
  %96 = vmatpush1.bf16.msra.mxu0 %v78
  %97 = vmatprep.subr.bf16.mxu0 0
  %98 = vmatpush1.bf16.msra.mxu0 %v79
  %99 = vmatprep.subr.bf16.mxu0 0
  %100 = vmatpush1.bf16.msra.mxu0 %v80
  %101 = vmatprep.subr.bf16.mxu0 0
  %102 = vmatpush1.bf16.msra.mxu0 %v81
  %103 = vmatprep.subr.bf16.mxu0 0
  %104 = vmatpush1.bf16.msra.mxu0 %v82
  %105 = vmatprep.subr.bf16.mxu0 0
  %106 = vmatpush1.bf16.msra.mxu0 %v83
  %107 = vmatprep.subr.bf16.mxu0 0
  %108 = vmatpush1.bf16.msra.mxu0 %v84
  %109 = vmatprep.subr.bf16.mxu0 0
  %110 = vmatpush1.bf16.msra.mxu0 0
  %111 = vmatprep.subr.bf16.mxu0 0
  %112 = vmatpush1.bf16.msra.mxu0 0
  %113 = vmatprep.subr.bf16.mxu0 0
  %114 = vmatpush1.bf16.msra.mxu0 0
  %115 = vmatprep.subr.bf16.mxu0 0
  %116 = vmatpush1.bf16.msra.mxu0 0
  %117 = vmatprep.subr.bf16.mxu0 0
  %118 = vmatpush1.bf16.msra.mxu0 0
  %119 = vmatprep.subr.bf16.mxu0 0
  %120 = vmatpush1.bf16.msra.mxu0 0
  %121 = vmatprep.subr.bf16.mxu0 0
  %122 = vmatpush1.bf16.msra.mxu0 0
  %123 = vmatprep.subr.bf16.mxu0 0
  %124 = vmatpush1.bf16.msra.mxu0 0
  %125 = vmatprep.mubr.bf16.mxu0 0
  %126 = vmatmul.mubr.bf16.gmra.mrb[0].mxu0 %v28
  %v127 = vpop.f32.mrb[0].mxu0
  %v128 = vadd.f32 0.0, %v127
  %v129 = vpop.f32.mrb[0].mxu0
  %v130 = vpop.f32.mrb[0].mxu0
  %v131 = vadd.f32 0.0, %v130
  %v132 = vpop.f32.mrb[0].mxu0
  %133 = vdwg.mxu0
  %s134 = scalar_lea.vmem %s1, 64
  %v135 = vld [vmem:[%s134] sm:$0xf]
  %v136 = vld [vmem:[%s134 + $0x4] sm:$0xf]
  %v137 = vld [vmem:[%s134 + $0x8] sm:$0xf]
  %v138 = vld [vmem:[%s134 + $0xc] sm:$0xf]
  %v139 = vld [vmem:[%s134 + $0x10] sm:$0xf]
  %v140 = vld [vmem:[%s134 + $0x14] sm:$0xf]
  %v141 = vld [vmem:[%s134 + $0x18] sm:$0xf]
  %v142 = vld [vmem:[%s134 + $0x1c] sm:$0xf]
  %v143 = vld [vmem:[%s134 + $0x20] sm:$0xf]
  %v144 = vld [vmem:[%s134 + $0x24] sm:$0xf]
  %v145 = vld [vmem:[%s134 + $0x28] sm:$0xf]
  %v146 = vld [vmem:[%s134 + $0x2c] sm:$0xf]
  %v147 = vld [vmem:[%s134 + $0x30] sm:$0xf]
  %v148 = vld [vmem:[%s134 + $0x34] sm:$0xf]
  %v149 = vld [vmem:[%s134 + $0x38] sm:$0xf]
  %v150 = vld [vmem:[%s134 + $0x3c] sm:$0xf]
  %s151 = scalar_lea.vmem %s1, 128
  %v152 = vld [vmem:[%s151] sm:$0xf]
  %v153 = vld [vmem:[%s151 + $0x4] sm:$0xf]
  %v154 = vld [vmem:[%s151 + $0x8] sm:$0xf]
  %v155 = vld [vmem:[%s151 + $0xc] sm:$0xf]
  %v156 = vld [vmem:[%s151 + $0x10] sm:$0xf]
  %v157 = vld [vmem:[%s151 + $0x14] sm:$0xf]
  %v158 = vld [vmem:[%s151 + $0x18] sm:$0xf]
  %v159 = vld [vmem:[%s151 + $0x1c] sm:$0xf]
  %v160 = vld [vmem:[%s151 + $0x20] sm:$0xf]
  %v161 = vld [vmem:[%s151 + $0x24] sm:$0xf]
  %v162 = vld [vmem:[%s151 + $0x28] sm:$0xf]
  %v163 = vld [vmem:[%s151 + $0x2c] sm:$0xf]
  %v164 = vld [vmem:[%s151 + $0x30] sm:$0xf]
  %v165 = vld [vmem:[%s151 + $0x34] sm:$0xf]
  %v166 = vld [vmem:[%s151 + $0x38] sm:$0xf]
  %v167 = vld [vmem:[%s151 + $0x3c] sm:$0xf]
  %v184 = vunpack.c.l.b16 %v152
  %v185 = vunpack.c.l.b16 %v153
  %v186 = vunpack.c.l.b16 %v154
  %v187 = vunpack.c.l.b16 %v155
  %v188 = vunpack.c.l.b16 %v156
  %v189 = vunpack.c.l.b16 %v157
  %v190 = vunpack.c.l.b16 %v158
  %v191 = vunpack.c.l.b16 %v159
  %v192 = vunpack.c.l.b16 %v160
  %v193 = vunpack.c.l.b16 %v161
  %v194 = vunpack.c.l.b16 %v162
  %v195 = vunpack.c.l.b16 %v163
  %v196 = vunpack.c.l.b16 %v164
  %v197 = vunpack.c.l.b16 %v165
  %v198 = vunpack.c.l.b16 %v166
  %v199 = vunpack.c.l.b16 %v167
  %v200 = vpack.c.b16 %v185, %v184
  %v201 = vpack.c.b16 %v187, %v186
  %v202 = vpack.c.b16 %v189, %v188
  %v203 = vpack.c.b16 %v191, %v190
  %v204 = vpack.c.b16 %v193, %v192
  %v205 = vpack.c.b16 %v195, %v194
  %v206 = vpack.c.b16 %v197, %v196
  %v207 = vpack.c.b16 %v199, %v198
  %216 = vmatprep.subr.bf16.mxu0 0
  %217 = vmatpush1.bf16.msra.mxu0 %v200
  %218 = vmatprep.subr.bf16.mxu0 0
  %219 = vmatpush1.bf16.msra.mxu0 %v201
  %220 = vmatprep.subr.bf16.mxu0 0
  %221 = vmatpush1.bf16.msra.mxu0 %v202
  %222 = vmatprep.subr.bf16.mxu0 0
  %223 = vmatpush1.bf16.msra.mxu0 %v203
  %224 = vmatprep.subr.bf16.mxu0 0
  %225 = vmatpush1.bf16.msra.mxu0 %v204
  %226 = vmatprep.subr.bf16.mxu0 0
  %227 = vmatpush1.bf16.msra.mxu0 %v205
  %228 = vmatprep.subr.bf16.mxu0 0
  %229 = vmatpush1.bf16.msra.mxu0 %v206
  %230 = vmatprep.subr.bf16.mxu0 0
  %231 = vmatpush1.bf16.msra.mxu0 %v207
  %232 = vmatprep.subr.bf16.mxu0 0
  %233 = vmatpush1.bf16.msra.mxu0 0
  %234 = vmatprep.subr.bf16.mxu0 0
  %235 = vmatpush1.bf16.msra.mxu0 0
  %236 = vmatprep.subr.bf16.mxu0 0
  %237 = vmatpush1.bf16.msra.mxu0 0
  %238 = vmatprep.subr.bf16.mxu0 0
  %239 = vmatpush1.bf16.msra.mxu0 0
  %240 = vmatprep.subr.bf16.mxu0 0
  %241 = vmatpush1.bf16.msra.mxu0 0
  %242 = vmatprep.subr.bf16.mxu0 0
  %243 = vmatpush1.bf16.msra.mxu0 0
  %244 = vmatprep.subr.bf16.mxu0 0
  %245 = vmatpush1.bf16.msra.mxu0 0
  %246 = vmatprep.subr.bf16.mxu0 0
  %247 = vmatpush1.bf16.msra.mxu0 0
  %248 = vmatprep.mubr.bf16.mxu0 0
  %249 = vmatmul.mubr.bf16.gmra.mrb[0].mxu0 %v28
  %v250 = vpop.f32.mrb[0].mxu0
  %v251 = vadd.f32 0.0, %v250
  %v252 = vpop.f32.mrb[0].mxu0
  %v253 = vpop.f32.mrb[0].mxu0
  %v254 = vadd.f32 0.0, %v253
  %v255 = vpop.f32.mrb[0].mxu0
  %256 = vdwg.mxu0
  %v257 = vrot.slane %v128, 7
  %v258 = vrot.slane %v131, 7
  %vm259 = vcmp.lt.s32.totalorder %v22, 1
  %v260 = vsel %vm259, %v257, %v258
  %v261 = vsel %vm259, %v258, %v257
  %v262 = vsel %vm24, 0.0, %v261
  %v263 = vsel %vm25, 0.0, %v260
  %v264 = vrot.slane %v251, 1
  %v265 = vrot.slane %v254, 1
  %vm266 = vcmp.lt.s32.totalorder %v22, 7
  %v267 = vsel %vm266, %v264, %v265
  %v268 = vsel %vm266, %v265, %v264
  %v269 = vsel %vm26, 0.0, %v267
  %v270 = vsel %vm27, 0.0, %v268
  %v287 = vunpack.c.l.b16 %v135
  %v288 = vunpack.c.l.b16 %v136
  %v289 = vunpack.c.l.b16 %v137
  %v290 = vunpack.c.l.b16 %v138
  %v291 = vunpack.c.l.b16 %v139
  %v292 = vunpack.c.l.b16 %v140
  %v293 = vunpack.c.l.b16 %v141
  %v294 = vunpack.c.l.b16 %v142
  %v295 = vunpack.c.l.b16 %v143
  %v296 = vunpack.c.l.b16 %v144
  %v297 = vunpack.c.l.b16 %v145
  %v298 = vunpack.c.l.b16 %v146
  %v299 = vunpack.c.l.b16 %v147
  %v300 = vunpack.c.l.b16 %v148
  %v301 = vunpack.c.l.b16 %v149
  %v302 = vunpack.c.l.b16 %v150
  %v303 = vpack.c.b16 %v288, %v287
  %v304 = vpack.c.b16 %v290, %v289
  %v305 = vpack.c.b16 %v292, %v291
  %v306 = vpack.c.b16 %v294, %v293
  %v307 = vpack.c.b16 %v296, %v295
  %v308 = vpack.c.b16 %v298, %v297
  %v309 = vpack.c.b16 %v300, %v299
  %v310 = vpack.c.b16 %v302, %v301
  %319 = vmatprep.subr.bf16.mxu0 0
  %320 = vmatpush1.bf16.msra.mxu0 %v303
  %321 = vmatprep.subr.bf16.mxu0 0
  %322 = vmatpush1.bf16.msra.mxu0 %v304
  %323 = vmatprep.subr.bf16.mxu0 0
  %324 = vmatpush1.bf16.msra.mxu0 %v305
  %325 = vmatprep.subr.bf16.mxu0 0
  %326 = vmatpush1.bf16.msra.mxu0 %v306
  %327 = vmatprep.subr.bf16.mxu0 0
  %328 = vmatpush1.bf16.msra.mxu0 %v307
  %329 = vmatprep.subr.bf16.mxu0 0
  %330 = vmatpush1.bf16.msra.mxu0 %v308
  %331 = vmatprep.subr.bf16.mxu0 0
  %332 = vmatpush1.bf16.msra.mxu0 %v309
  %333 = vmatprep.subr.bf16.mxu0 0
  %334 = vmatpush1.bf16.msra.mxu0 %v310
  %335 = vmatprep.subr.bf16.mxu0 0
  %336 = vmatpush1.bf16.msra.mxu0 0
  %337 = vmatprep.subr.bf16.mxu0 0
  %338 = vmatpush1.bf16.msra.mxu0 0
  %339 = vmatprep.subr.bf16.mxu0 0
  %340 = vmatpush1.bf16.msra.mxu0 0
  %341 = vmatprep.subr.bf16.mxu0 0
  %342 = vmatpush1.bf16.msra.mxu0 0
  %343 = vmatprep.subr.bf16.mxu0 0
  %344 = vmatpush1.bf16.msra.mxu0 0
  %345 = vmatprep.subr.bf16.mxu0 0
  %346 = vmatpush1.bf16.msra.mxu0 0
  %347 = vmatprep.subr.bf16.mxu0 0
  %348 = vmatpush1.bf16.msra.mxu0 0
  %349 = vmatprep.subr.bf16.mxu0 0
  %350 = vmatpush1.bf16.msra.mxu0 0
  %351 = vmatprep.mubr.bf16.mxu0 0
  %352 = vmatmul.mubr.bf16.gmra.mrb[0].mxu0 %v28
  %v353 = vpop.f32.mrb[0].mxu0
  %v354 = vadd.f32 %v262, %v353
  %v355 = vpop.f32.mrb[0].mxu0
  %v356 = vpop.f32.mrb[0].mxu0
  %v357 = vadd.f32 %v263, %v356
  %v358 = vpop.f32.mrb[0].mxu0
  %359 = vdwg.mxu0
  %v360 = vadd.f32 %v354, %v269
  %v361 = vadd.f32 %v357, %v270
  %v362 = vlaneseq
  %v363 = vshrl.u32 %v362, 7
  %v364 = vsub.s32 0, %v363
  %v365 = vrot.slane %v20, %v364
  %v366 = vadd.f32 %v360, %v365
  %v367 = vadd.f32 %v361, %v365
  %v368 = vmax.f32 %v366, 0.0
  %v369 = vmax.f32 %v367, 0.0
  %v370 = vpack.c.bf16 %v369, %v368
  %v371 = vld [vmem:[%s2] sm:$0xf]
  %v372 = vld [vmem:[%s2 + $0x4] sm:$0xf]
  %v373 = vld [vmem:[%s2 + $0x8] sm:$0xf]
  %v374 = vld [vmem:[%s2 + $0xc] sm:$0xf]
  %v375 = vld [vmem:[%s2 + $0x10] sm:$0xf]
  %v376 = vld [vmem:[%s2 + $0x14] sm:$0xf]
  %v377 = vld [vmem:[%s2 + $0x18] sm:$0xf]
  %v378 = vld [vmem:[%s2 + $0x1c] sm:$0xf]
  %v379 = vld [vmem:[%s2 + $0x20] sm:$0xf]
  %v380 = vld [vmem:[%s2 + $0x24] sm:$0xf]
  %v381 = vld [vmem:[%s2 + $0x28] sm:$0xf]
  %v382 = vld [vmem:[%s2 + $0x2c] sm:$0xf]
  %v383 = vld [vmem:[%s2 + $0x30] sm:$0xf]
  %v384 = vld [vmem:[%s2 + $0x34] sm:$0xf]
  %v385 = vld [vmem:[%s2 + $0x38] sm:$0xf]
  %v386 = vld [vmem:[%s2 + $0x3c] sm:$0xf]
  %v403 = vunpack.c.l.b16 %v371
  %v404 = vunpack.c.l.b16 %v372
  %v405 = vunpack.c.l.b16 %v373
  %v406 = vunpack.c.l.b16 %v374
  %v407 = vunpack.c.l.b16 %v375
  %v408 = vunpack.c.l.b16 %v376
  %v409 = vunpack.c.l.b16 %v377
  %v410 = vunpack.c.l.b16 %v378
  %v411 = vunpack.c.l.b16 %v379
  %v412 = vunpack.c.l.b16 %v380
  %v413 = vunpack.c.l.b16 %v381
  %v414 = vunpack.c.l.b16 %v382
  %v415 = vunpack.c.l.b16 %v383
  %v416 = vunpack.c.l.b16 %v384
  %v417 = vunpack.c.l.b16 %v385
  %v418 = vunpack.c.l.b16 %v386
  %v419 = vpack.c.b16 %v404, %v403
  %v420 = vpack.c.b16 %v406, %v405
  %v421 = vpack.c.b16 %v408, %v407
  %v422 = vpack.c.b16 %v410, %v409
  %v423 = vpack.c.b16 %v412, %v411
  %v424 = vpack.c.b16 %v414, %v413
  %v425 = vpack.c.b16 %v416, %v415
  %v426 = vpack.c.b16 %v418, %v417
  %435 = vmatprep.subr.bf16.mxu0 0
  %436 = vmatpush1.bf16.msra.mxu0 %v419
  %437 = vmatprep.subr.bf16.mxu0 0
  %438 = vmatpush1.bf16.msra.mxu0 %v420
  %439 = vmatprep.subr.bf16.mxu0 0
  %440 = vmatpush1.bf16.msra.mxu0 %v421
  %441 = vmatprep.subr.bf16.mxu0 0
  %442 = vmatpush1.bf16.msra.mxu0 %v422
  %443 = vmatprep.subr.bf16.mxu0 0
  %444 = vmatpush1.bf16.msra.mxu0 %v423
  %445 = vmatprep.subr.bf16.mxu0 0
  %446 = vmatpush1.bf16.msra.mxu0 %v424
  %447 = vmatprep.subr.bf16.mxu0 0
  %448 = vmatpush1.bf16.msra.mxu0 %v425
  %449 = vmatprep.subr.bf16.mxu0 0
  %450 = vmatpush1.bf16.msra.mxu0 %v426
  %451 = vmatprep.subr.bf16.mxu0 0
  %452 = vmatpush1.bf16.msra.mxu0 0
  %453 = vmatprep.subr.bf16.mxu0 0
  %454 = vmatpush1.bf16.msra.mxu0 0
  %455 = vmatprep.subr.bf16.mxu0 0
  %456 = vmatpush1.bf16.msra.mxu0 0
  %457 = vmatprep.subr.bf16.mxu0 0
  %458 = vmatpush1.bf16.msra.mxu0 0
  %459 = vmatprep.subr.bf16.mxu0 0
  %460 = vmatpush1.bf16.msra.mxu0 0
  %461 = vmatprep.subr.bf16.mxu0 0
  %462 = vmatpush1.bf16.msra.mxu0 0
  %463 = vmatprep.subr.bf16.mxu0 0
  %464 = vmatpush1.bf16.msra.mxu0 0
  %465 = vmatprep.subr.bf16.mxu0 0
  %466 = vmatpush1.bf16.msra.mxu0 0
  %467 = vmatprep.mubr.bf16.mxu0 0
  %468 = vmatmul.mubr.bf16.gmra.mrb[0].mxu0 %v370
  %v469 = vpop.f32.mrb[0].mxu0
  %v470 = vadd.f32 0.0, %v469
  %v471 = vpop.f32.mrb[0].mxu0
  %v472 = vpop.f32.mrb[0].mxu0
  %v473 = vadd.f32 0.0, %v472
  %v474 = vpop.f32.mrb[0].mxu0
  %475 = vdwg.mxu0
  %s476 = scalar_lea.vmem %s2, 64
  %v477 = vld [vmem:[%s476] sm:$0xf]
  %v478 = vld [vmem:[%s476 + $0x4] sm:$0xf]
  %v479 = vld [vmem:[%s476 + $0x8] sm:$0xf]
  %v480 = vld [vmem:[%s476 + $0xc] sm:$0xf]
  %v481 = vld [vmem:[%s476 + $0x10] sm:$0xf]
  %v482 = vld [vmem:[%s476 + $0x14] sm:$0xf]
  %v483 = vld [vmem:[%s476 + $0x18] sm:$0xf]
  %v484 = vld [vmem:[%s476 + $0x1c] sm:$0xf]
  %v485 = vld [vmem:[%s476 + $0x20] sm:$0xf]
  %v486 = vld [vmem:[%s476 + $0x24] sm:$0xf]
  %v487 = vld [vmem:[%s476 + $0x28] sm:$0xf]
  %v488 = vld [vmem:[%s476 + $0x2c] sm:$0xf]
  %v489 = vld [vmem:[%s476 + $0x30] sm:$0xf]
  %v490 = vld [vmem:[%s476 + $0x34] sm:$0xf]
  %v491 = vld [vmem:[%s476 + $0x38] sm:$0xf]
  %v492 = vld [vmem:[%s476 + $0x3c] sm:$0xf]
  %s493 = scalar_lea.vmem %s2, 128
  %v494 = vld [vmem:[%s493] sm:$0xf]
  %v495 = vld [vmem:[%s493 + $0x4] sm:$0xf]
  %v496 = vld [vmem:[%s493 + $0x8] sm:$0xf]
  %v497 = vld [vmem:[%s493 + $0xc] sm:$0xf]
  %v498 = vld [vmem:[%s493 + $0x10] sm:$0xf]
  %v499 = vld [vmem:[%s493 + $0x14] sm:$0xf]
  %v500 = vld [vmem:[%s493 + $0x18] sm:$0xf]
  %v501 = vld [vmem:[%s493 + $0x1c] sm:$0xf]
  %v502 = vld [vmem:[%s493 + $0x20] sm:$0xf]
  %v503 = vld [vmem:[%s493 + $0x24] sm:$0xf]
  %v504 = vld [vmem:[%s493 + $0x28] sm:$0xf]
  %v505 = vld [vmem:[%s493 + $0x2c] sm:$0xf]
  %v506 = vld [vmem:[%s493 + $0x30] sm:$0xf]
  %v507 = vld [vmem:[%s493 + $0x34] sm:$0xf]
  %v508 = vld [vmem:[%s493 + $0x38] sm:$0xf]
  %v509 = vld [vmem:[%s493 + $0x3c] sm:$0xf]
  %v526 = vunpack.c.l.b16 %v494
  %v527 = vunpack.c.l.b16 %v495
  %v528 = vunpack.c.l.b16 %v496
  %v529 = vunpack.c.l.b16 %v497
  %v530 = vunpack.c.l.b16 %v498
  %v531 = vunpack.c.l.b16 %v499
  %v532 = vunpack.c.l.b16 %v500
  %v533 = vunpack.c.l.b16 %v501
  %v534 = vunpack.c.l.b16 %v502
  %v535 = vunpack.c.l.b16 %v503
  %v536 = vunpack.c.l.b16 %v504
  %v537 = vunpack.c.l.b16 %v505
  %v538 = vunpack.c.l.b16 %v506
  %v539 = vunpack.c.l.b16 %v507
  %v540 = vunpack.c.l.b16 %v508
  %v541 = vunpack.c.l.b16 %v509
  %v542 = vpack.c.b16 %v527, %v526
  %v543 = vpack.c.b16 %v529, %v528
  %v544 = vpack.c.b16 %v531, %v530
  %v545 = vpack.c.b16 %v533, %v532
  %v546 = vpack.c.b16 %v535, %v534
  %v547 = vpack.c.b16 %v537, %v536
  %v548 = vpack.c.b16 %v539, %v538
  %v549 = vpack.c.b16 %v541, %v540
  %558 = vmatprep.subr.bf16.mxu0 0
  %559 = vmatpush1.bf16.msra.mxu0 %v542
  %560 = vmatprep.subr.bf16.mxu0 0
  %561 = vmatpush1.bf16.msra.mxu0 %v543
  %562 = vmatprep.subr.bf16.mxu0 0
  %563 = vmatpush1.bf16.msra.mxu0 %v544
  %564 = vmatprep.subr.bf16.mxu0 0
  %565 = vmatpush1.bf16.msra.mxu0 %v545
  %566 = vmatprep.subr.bf16.mxu0 0
  %567 = vmatpush1.bf16.msra.mxu0 %v546
  %568 = vmatprep.subr.bf16.mxu0 0
  %569 = vmatpush1.bf16.msra.mxu0 %v547
  %570 = vmatprep.subr.bf16.mxu0 0
  %571 = vmatpush1.bf16.msra.mxu0 %v548
  %572 = vmatprep.subr.bf16.mxu0 0
  %573 = vmatpush1.bf16.msra.mxu0 %v549
  %574 = vmatprep.subr.bf16.mxu0 0
  %575 = vmatpush1.bf16.msra.mxu0 0
  %576 = vmatprep.subr.bf16.mxu0 0
  %577 = vmatpush1.bf16.msra.mxu0 0
  %578 = vmatprep.subr.bf16.mxu0 0
  %579 = vmatpush1.bf16.msra.mxu0 0
  %580 = vmatprep.subr.bf16.mxu0 0
  %581 = vmatpush1.bf16.msra.mxu0 0
  %582 = vmatprep.subr.bf16.mxu0 0
  %583 = vmatpush1.bf16.msra.mxu0 0
  %584 = vmatprep.subr.bf16.mxu0 0
  %585 = vmatpush1.bf16.msra.mxu0 0
  %586 = vmatprep.subr.bf16.mxu0 0
  %587 = vmatpush1.bf16.msra.mxu0 0
  %588 = vmatprep.subr.bf16.mxu0 0
  %589 = vmatpush1.bf16.msra.mxu0 0
  %590 = vmatprep.mubr.bf16.mxu0 0
  %591 = vmatmul.mubr.bf16.gmra.mrb[0].mxu0 %v370
  %v592 = vpop.f32.mrb[0].mxu0
  %v593 = vadd.f32 0.0, %v592
  %v594 = vpop.f32.mrb[0].mxu0
  %v595 = vpop.f32.mrb[0].mxu0
  %v596 = vadd.f32 0.0, %v595
  %v597 = vpop.f32.mrb[0].mxu0
  %598 = vdwg.mxu0
  %v599 = vrot.slane %v470, 7
  %v600 = vrot.slane %v473, 7
  %v601 = vsel %vm259, %v599, %v600
  %v602 = vsel %vm259, %v600, %v599
  %v603 = vsel %vm24, 0.0, %v602
  %v604 = vsel %vm25, 0.0, %v601
  %v605 = vrot.slane %v593, 1
  %v606 = vrot.slane %v596, 1
  %v607 = vsel %vm266, %v605, %v606
  %v608 = vsel %vm266, %v606, %v605
  %v609 = vsel %vm26, 0.0, %v607
  %v610 = vsel %vm27, 0.0, %v608
  %v627 = vunpack.c.l.b16 %v477
  %v628 = vunpack.c.l.b16 %v478
  %v629 = vunpack.c.l.b16 %v479
  %v630 = vunpack.c.l.b16 %v480
  %v631 = vunpack.c.l.b16 %v481
  %v632 = vunpack.c.l.b16 %v482
  %v633 = vunpack.c.l.b16 %v483
  %v634 = vunpack.c.l.b16 %v484
  %v635 = vunpack.c.l.b16 %v485
  %v636 = vunpack.c.l.b16 %v486
  %v637 = vunpack.c.l.b16 %v487
  %v638 = vunpack.c.l.b16 %v488
  %v639 = vunpack.c.l.b16 %v489
  %v640 = vunpack.c.l.b16 %v490
  %v641 = vunpack.c.l.b16 %v491
  %v642 = vunpack.c.l.b16 %v492
  %v643 = vpack.c.b16 %v628, %v627
  %v644 = vpack.c.b16 %v630, %v629
  %v645 = vpack.c.b16 %v632, %v631
  %v646 = vpack.c.b16 %v634, %v633
  %v647 = vpack.c.b16 %v636, %v635
  %v648 = vpack.c.b16 %v638, %v637
  %v649 = vpack.c.b16 %v640, %v639
  %v650 = vpack.c.b16 %v642, %v641
  %659 = vmatprep.subr.bf16.mxu0 0
  %660 = vmatpush1.bf16.msra.mxu0 %v643
  %661 = vmatprep.subr.bf16.mxu0 0
  %662 = vmatpush1.bf16.msra.mxu0 %v644
  %663 = vmatprep.subr.bf16.mxu0 0
  %664 = vmatpush1.bf16.msra.mxu0 %v645
  %665 = vmatprep.subr.bf16.mxu0 0
  %666 = vmatpush1.bf16.msra.mxu0 %v646
  %667 = vmatprep.subr.bf16.mxu0 0
  %668 = vmatpush1.bf16.msra.mxu0 %v647
  %669 = vmatprep.subr.bf16.mxu0 0
  %670 = vmatpush1.bf16.msra.mxu0 %v648
  %671 = vmatprep.subr.bf16.mxu0 0
  %672 = vmatpush1.bf16.msra.mxu0 %v649
  %673 = vmatprep.subr.bf16.mxu0 0
  %674 = vmatpush1.bf16.msra.mxu0 %v650
  %675 = vmatprep.subr.bf16.mxu0 0
  %676 = vmatpush1.bf16.msra.mxu0 0
  %677 = vmatprep.subr.bf16.mxu0 0
  %678 = vmatpush1.bf16.msra.mxu0 0
  %679 = vmatprep.subr.bf16.mxu0 0
  %680 = vmatpush1.bf16.msra.mxu0 0
  %681 = vmatprep.subr.bf16.mxu0 0
  %682 = vmatpush1.bf16.msra.mxu0 0
  %683 = vmatprep.subr.bf16.mxu0 0
  %684 = vmatpush1.bf16.msra.mxu0 0
  %685 = vmatprep.subr.bf16.mxu0 0
  %686 = vmatpush1.bf16.msra.mxu0 0
  %687 = vmatprep.subr.bf16.mxu0 0
  %688 = vmatpush1.bf16.msra.mxu0 0
  %689 = vmatprep.subr.bf16.mxu0 0
  %690 = vmatpush1.bf16.msra.mxu0 0
  %691 = vmatprep.mubr.bf16.mxu0 0
  %692 = vmatmul.mubr.bf16.gmra.mrb[0].mxu0 %v370
  %v693 = vpop.f32.mrb[0].mxu0
  %v694 = vadd.f32 %v603, %v693
  %v695 = vpop.f32.mrb[0].mxu0
  %v696 = vpop.f32.mrb[0].mxu0
  %v697 = vadd.f32 %v604, %v696
  %v698 = vpop.f32.mrb[0].mxu0
  %699 = vdwg.mxu0
  %v700 = vadd.f32 %v694, %v609
  %v701 = vadd.f32 %v697, %v610
  %v702 = vlaneseq
  %v703 = vshrl.u32 %v702, 7
  %v704 = vsub.s32 1, %v703
  %v705 = vrot.slane %v20, %v704
  %v706 = vadd.f32 %v700, %v705
  %v707 = vadd.f32 %v701, %v705
  %v708 = vadd.f32 %v706, %v18
  %v709 = vadd.f32 %v707, %v19
  %v710 = vmax.f32 %v708, 0.0
  %v711 = vmax.f32 %v709, 0.0
  %712 = vst [vmem:[%s4] sm:$0xff] %v710
  %713 = vst [vmem:[%s4 + $0x8] sm:$0xff] %v711
  // Predicated region
  $region18: #{residual_forward.1} parent=0 // pred_check
    _
  $region19: #{residual_forward.1} parent=0 // pred_check_branch
    %715 = sbr.rel (0) target = $region21
  $region20: #{residual_forward.1} parent=0 // pred_region
    _
  $region21: #{residual_forward.1} parent=0 // pred_fallthru
    _
  // Predicated region
  $region22: #{residual_forward.1} parent=0 // pred_check
    _
  $region23: #{residual_forward.1} parent=0 // pred_check_branch
    %717 = sbr.rel (0) target = $region25
  $region24: #{residual_forward.1} parent=0 // pred_region
    _
  $region25: #{residual_forward.1} parent=0 // pred_fallthru
    _

</llo_original>
